<compile_context>
chip_gen: v6e
topology: v6e:2x2x1
jax: 0.10.0
libtpu: 0.0.40
codegen_flags: <defaults>
</compile_context>

<pallas_src>
import math
import functools

import jax
import jax.numpy as jnp
from jax import lax
from jax.experimental import pallas as pl
from jax.experimental.pallas import tpu as pltpu

_MAX_IDS_PER_CALL = 32768          # keep the scalar-prefetched id array well inside SMEM
_SMALL_TABLE_BYTES = 4 * 1024 * 1024


def _round_up(x, m):
    return ((x + m - 1) // m) * m


# --------------------------------------------------------------------------------------
# Fast path: embedding table resident in VMEM, per-row dynamic gather on the VPU.
# --------------------------------------------------------------------------------------
def _embed_resident_kernel(ids_ref, table_ref, out_ref, *, tile, vocab, scale, unroll):
    # ids_ref   : (n_chunk,) int32 in SMEM (scalar prefetch)
    # table_ref : (V, E) table, resident VMEM block
    # out_ref   : (tile, E) output tile in VMEM
    base = pl.program_id(0) * tile

    def body(t, carry):
        tok = jnp.clip(ids_ref[base + t], 0, vocab - 1)
        row = table_ref[pl.ds(tok, 1), :]                       # (1, E) dynamic-row load
        out_ref[pl.ds(t, 1), :] = (row.astype(jnp.float32) * scale).astype(out_ref.dtype)
        return carry

    lax.fori_loop(0, tile, body, 0, unroll=unroll)


# --------------------------------------------------------------------------------------
# General path: table stays in HBM, deep pipeline of row DMAs directly into out_ref.
# --------------------------------------------------------------------------------------
def _embed_dma_kernel(ids_ref, emb_hbm, out_ref, sems, *, tile, nbuf, vocab, scale,
                      n_valid):
    # ids_ref : (n_chunk,) int32 in SMEM      emb_hbm : (V, E) in HBM (pl.ANY)
    # out_ref : (tile, E) output tile VMEM    sems    : (nbuf,) DMA semaphores
    base = pl.program_id(0) * tile

    def _tok(t):
        return jnp.clip(ids_ref[base + t], 0, vocab - 1)

    def _start(t, tok, slot):
        pltpu.make_async_copy(emb_hbm.at[tok], out_ref.at[t], sems.at[slot]).start()

    def _wait(t, slot):
        # Same-sized static src: no id reload / clamp on the wait path.
        pltpu.make_async_copy(emb_hbm.at[0], out_ref.at[t], sems.at[slot]).wait()

    def _scale(t):
        row = out_ref[pl.ds(t, 1), :]
        out_ref[pl.ds(t, 1), :] = (row.astype(jnp.float32) * scale).astype(out_ref.dtype)

    # Prime: up to nbuf row copies in flight, straight into the output tile.
    @pl.loop(0, nbuf)
    def _prime(t):
        tok = _tok(t)

        @pl.when(base + t < n_valid)
        def _():
            _start(t, tok, t)

    # Steady state: retire the oldest copy in a slot, issue the next one, then scale
    # the retired row (scale work hides under the still-in-flight copies).
    if tile > nbuf:
        def steady(t, carry):
            t_old = t - nbuf
            slot = t % nbuf
            tok = _tok(t)                               # read id before the wait
            valid_new = base + t < n_valid
            valid_old = base + t_old < n_valid

            @pl.when(valid_old)
            def _():
                _wait(t_old, slot)

            @pl.when(valid_new)
            def _():
                _start(t, tok, slot)

            @pl.when(valid_old)
            def _():
                _scale(t_old)

            return carry

        lax.fori_loop(nbuf, tile, steady, 0, unroll=4)

    # Drain the final nbuf copies and scale their rows.
    @pl.loop(tile - nbuf, tile)
    def _drain(t):
        @pl.when(base + t < n_valid)
        def _():
            _wait(t, t % nbuf)
            _scale(t)


# --------------------------------------------------------------------------------------
# Wrapper
# --------------------------------------------------------------------------------------
def token_embedding(tokens, embedding_table, *, token_tile=256, resident_table=None):
    """Pallas TPU equivalent of nn.Embedding(V, E)(tokens.long()) * sqrt(E)."""
    vocab, embed = (int(d) for d in embedding_table.shape)
    dtype = embedding_table.dtype
    itemsize = int(jnp.dtype(dtype).itemsize)
    scale = math.sqrt(float(embed))

    orig_shape = tokens.shape
    flat = tokens.reshape(-1).astype(jnp.int32)
    n = int(flat.shape[0])
    if n == 0:
        return jnp.zeros((*orig_shape, embed), dtype)

    # ---- hardware-derived budgets ----------------------------------------------------
    try:
        vmem_cap = int(pltpu.get_tpu_info().vmem_capacity_bytes)
    except Exception:
        vmem_cap = 64 * 1024 * 1024                      # conservative (v7x-sized) fallback
    vmem_limit = int(min(vmem_cap * 3 // 4, 100 * 1024 * 1024))

    # Minimum sublane tile for the (tile, E) output block: f32 -> 8, bf16 -> 16, int8 -> 32.
    min_sub = max(8, 32 // itemsize)

    table_bytes = vocab * embed * itemsize
    row_bytes = embed * itemsize
    if resident_table is None:
        resident_table = table_bytes <= _SMALL_TABLE_BYTES

    # ---- token tile from the VMEM budget ---------------------------------------------
    budget = vmem_limit - 4 * 1024 * 1024                # misc headroom
    if resident_table:
        budget -= 2 * table_bytes                        # worst case: double-buffered table
    max_tile = max(min_sub, budget // (2 * row_bytes))   # output block is double-buffered
    tile = max(min_sub, (min(int(token_tile), int(max_tile)) // min_sub) * min_sub)

    n_round = _round_up(n, min_sub)
    tile = min(tile, n_round)
    # Megacore (v7x): if everything fits in a single tile, split so both TCs get work.
    if tile >= n_round and n_round > min_sub:
        tile = _round_up((n + 1) // 2, min_sub)
    tile = max(min_sub, (tile // min_sub) * min_sub)

    # In-flight row-DMA depth: ~2 MiB in flight on v5e/v6e, ~4 MiB on v7x (higher HBM BW).
    target_inflight = 4 * 1024 * 1024 if vmem_cap <= 64 * 1024 * 1024 else 2 * 1024 * 1024
    nbuf = min(tile, max(16, min(target_inflight // row_bytes, 128)))

    n_total = _round_up(n, tile)
    if n_total > n:
        flat = jnp.concatenate([flat, jnp.zeros((n_total - n,), jnp.int32)])

    compiler_params = pltpu.CompilerParams(
        dimension_semantics=("parallel",),               # token tiles shard across TCs
        vmem_limit_bytes=vmem_limit,
    )

    # Chunk the token stream so the scalar-prefetched id block stays small in SMEM.
    chunk = tile * max(1, _MAX_IDS_PER_CALL // tile)
    outs = []
    for c0 in range(0, n_total, chunk):
        c1 = min(c0 + chunk, n_total)
        ids_c = flat[c0:c1]
        rows_c = c1 - c0
        num_tiles = rows_c // tile
        n_valid_c = min(max(n - c0, 0), rows_c)

        if resident_table:
            kernel = functools.partial(
                _embed_resident_kernel, tile=tile, vocab=vocab, scale=scale,
                unroll=min(8, tile))
            in_specs = [pl.BlockSpec((vocab, embed), lambda i, ids: (0, 0))]
            scratch = []
        else:
            kernel = functools.partial(
                _embed_dma_kernel, tile=tile, nbuf=nbuf, vocab=vocab, scale=scale,
                n_valid=n_valid_c)
            in_specs = [pl.BlockSpec(memory_space=pl.ANY)]
            scratch = [pltpu.SemaphoreType.DMA((nbuf,))]

        out_c = pl.pallas_call(
            kernel,
            out_shape=jax.ShapeDtypeStruct((rows_c, embed), dtype),
            grid_spec=pltpu.PrefetchScalarGridSpec(
                num_scalar_prefetch=1,                   # token ids -> SMEM
                grid=(num_tiles,),
                in_specs=in_specs,
                out_specs=pl.BlockSpec((tile, embed), lambda i, ids: (i, 0)),
                scratch_shapes=scratch,
            ),
            compiler_params=compiler_params,
        )(ids_c, embedding_table)
        outs.append(out_c)

    out = outs[0] if len(outs) == 1 else jnp.concatenate(outs, axis=0)
    return out[:n].reshape(*orig_shape, embed)


if __name__ == "__main__":
    vocab_size = 512
    embedding_size = 128
    batch, seq = 2, 8

    key = jax.random.PRNGKey(0)
    k_tok, k_emb, k_tok2 = jax.random.split(key, 3)

    # nn.Embedding default init is N(0, 1).
    embedding_table = jax.random.normal(
        k_emb, (vocab_size, embedding_size), dtype=jnp.float32)
    tokens = jax.random.randint(
        k_tok, (batch, seq), minval=0, maxval=vocab_size, dtype=jnp.int32)
    ref = embedding_table[tokens] * math.sqrt(embedding_size)

    # 1) Auto dispatch: small table -> resident-VMEM gather fast path (2 tiles).
    out = jax.block_until_ready(token_embedding(tokens, embedding_table))
    assert out.shape == (batch, seq, embedding_size), out.shape
    assert jnp.allclose(out, ref, atol=1e-5, rtol=1e-5), "mismatch (resident path)"

    # 2) Force the HBM DMA-gather path (large-table code path) on the same data.
    out2 = jax.block_until_ready(
        token_embedding(tokens, embedding_table, resident_table=False))
    assert jnp.allclose(out2, ref, atol=1e-5, rtol=1e-5), "mismatch (DMA path)"

    # 3) Multi-tile grid + padded tail (guarded row fetches) on the DMA path.
    tokens3 = jax.random.randint(
        k_tok2, (3, 37), minval=0, maxval=vocab_size, dtype=jnp.int32)
    ref3 = embedding_table[tokens3] * math.sqrt(embedding_size)
    out3 = jax.block_until_ready(
        token_embedding(tokens3, embedding_table, token_tile=16, resident_table=False))
    assert jnp.allclose(out3, ref3, atol=1e-5, rtol=1e-5), "mismatch (DMA multi-tile)"

    # 4) Multi-tile + padded tail on the resident fast path.
    out4 = jax.block_until_ready(token_embedding(tokens3, embedding_table))
    assert jnp.allclose(out4, ref3, atol=1e-5, rtol=1e-5), "mismatch (resident multi-tile)"

    print("KERNEL_OK")
</pallas_src>

<mosaic_0001>
module attributes {stable_mosaic.version = 11 : i64} {
  func.func @_embed_resident_kernel(%arg0: i32, %arg1: memref<16xi32, #tpu.memory_space<smem>>, %arg2: memref<512x128xf32, #tpu.memory_space<vmem>>, %arg3: memref<8x128xf32, #tpu.memory_space<vmem>>) attributes {dimension_semantics = [#tpu.dimension_semantics<parallel>], iteration_bounds = array<i64: 2>, scalar_prefetch = 1 : i64, scratch_operands = 0 : i64, tpu.core_type = #tpu.core_type<tc>, window_params = [{pipeline_mode = #tpu.pipeline_mode<synchronous>, transform_indices = @transform_0, window_bounds = array<i64: 512, 128>}, {transform_indices = @transform_1, window_bounds = array<i64: 8, 128>}]} {
    %c8_i32 = arith.constant 8 : i32
    %0 = arith.muli %arg0, %c8_i32 : i32
    %c0_i32 = arith.constant 0 : i32
    %1 = arith.addi %0, %c0_i32 : i32
    %2 = arith.index_cast %1 : i32 to index
    %3 = memref.load %arg1[%2] : memref<16xi32, #tpu.memory_space<smem>>
    %c0_i32_0 = arith.constant 0 : i32
    %c511_i32 = arith.constant 511 : i32
    %4 = arith.maxsi %c0_i32_0, %3 : i32
    %5 = arith.minsi %c511_i32, %4 : i32
    %6 = arith.index_cast %5 : i32 to index
    %c0 = arith.constant 0 : index
    %7 = vector.load %arg2[%6, %c0] : memref<512x128xf32, #tpu.memory_space<vmem>>, vector<1x128xf32>
    %cst = arith.constant 11.3137083 : f32
    %8 = vector.broadcast %cst : f32 to vector<1x128xf32>
    %9 = arith.mulf %7, %8 : vector<1x128xf32>
    %10 = arith.index_cast %c0_i32 : i32 to index
    %c0_1 = arith.constant 0 : index
    %11 = vector.load %arg3[%10, %c0_1] : memref<8x128xf32, #tpu.memory_space<vmem>>, vector<1x128xf32>
    tpu.vector_store %arg3[%10, %c0_1], %9 {strides = array<i32>} : memref<8x128xf32, #tpu.memory_space<vmem>>, vector<1x128xf32>,
    %c1_i32 = arith.constant 1 : i32
    %12 = arith.addi %0, %c1_i32 : i32
    %13 = arith.index_cast %12 : i32 to index
    %14 = memref.load %arg1[%13] : memref<16xi32, #tpu.memory_space<smem>>
    %c0_i32_2 = arith.constant 0 : i32
    %c511_i32_3 = arith.constant 511 : i32
    %15 = arith.maxsi %c0_i32_2, %14 : i32
    %16 = arith.minsi %c511_i32_3, %15 : i32
    %17 = arith.index_cast %16 : i32 to index
    %c0_4 = arith.constant 0 : index
    %18 = vector.load %arg2[%17, %c0_4] : memref<512x128xf32, #tpu.memory_space<vmem>>, vector<1x128xf32>
    %cst_5 = arith.constant 11.3137083 : f32
    %19 = vector.broadcast %cst_5 : f32 to vector<1x128xf32>
    %20 = arith.mulf %18, %19 : vector<1x128xf32>
    %21 = arith.index_cast %c1_i32 : i32 to index
    %c0_6 = arith.constant 0 : index
    %22 = vector.load %arg3[%21, %c0_6] : memref<8x128xf32, #tpu.memory_space<vmem>>, vector<1x128xf32>
    tpu.vector_store %arg3[%21, %c0_6], %20 {strides = array<i32>} : memref<8x128xf32, #tpu.memory_space<vmem>>, vector<1x128xf32>,
    %c2_i32 = arith.constant 2 : i32
    %23 = arith.addi %0, %c2_i32 : i32
    %24 = arith.index_cast %23 : i32 to index
    %25 = memref.load %arg1[%24] : memref<16xi32, #tpu.memory_space<smem>>
    %c0_i32_7 = arith.constant 0 : i32
    %c511_i32_8 = arith.constant 511 : i32
    %26 = arith.maxsi %c0_i32_7, %25 : i32
    %27 = arith.minsi %c511_i32_8, %26 : i32
    %28 = arith.index_cast %27 : i32 to index
    %c0_9 = arith.constant 0 : index
    %29 = vector.load %arg2[%28, %c0_9] : memref<512x128xf32, #tpu.memory_space<vmem>>, vector<1x128xf32>
    %cst_10 = arith.constant 11.3137083 : f32
    %30 = vector.broadcast %cst_10 : f32 to vector<1x128xf32>
    %31 = arith.mulf %29, %30 : vector<1x128xf32>
    %32 = arith.index_cast %c2_i32 : i32 to index
    %c0_11 = arith.constant 0 : index
    %33 = vector.load %arg3[%32, %c0_11] : memref<8x128xf32, #tpu.memory_space<vmem>>, vector<1x128xf32>
    tpu.vector_store %arg3[%32, %c0_11], %31 {strides = array<i32>} : memref<8x128xf32, #tpu.memory_space<vmem>>, vector<1x128xf32>,
    %c3_i32 = arith.constant 3 : i32
    %34 = arith.addi %0, %c3_i32 : i32
    %35 = arith.index_cast %34 : i32 to index
    %36 = memref.load %arg1[%35] : memref<16xi32, #tpu.memory_space<smem>>
    %c0_i32_12 = arith.constant 0 : i32
    %c511_i32_13 = arith.constant 511 : i32
    %37 = arith.maxsi %c0_i32_12, %36 : i32
    %38 = arith.minsi %c511_i32_13, %37 : i32
    %39 = arith.index_cast %38 : i32 to index
    %c0_14 = arith.constant 0 : index
    %40 = vector.load %arg2[%39, %c0_14] : memref<512x128xf32, #tpu.memory_space<vmem>>, vector<1x128xf32>
    %cst_15 = arith.constant 11.3137083 : f32
    %41 = vector.broadcast %cst_15 : f32 to vector<1x128xf32>
    %42 = arith.mulf %40, %41 : vector<1x128xf32>
    %43 = arith.index_cast %c3_i32 : i32 to index
    %c0_16 = arith.constant 0 : index
    %44 = vector.load %arg3[%43, %c0_16] : memref<8x128xf32, #tpu.memory_space<vmem>>, vector<1x128xf32>
    tpu.vector_store %arg3[%43, %c0_16], %42 {strides = array<i32>} : memref<8x128xf32, #tpu.memory_space<vmem>>, vector<1x128xf32>,
    %c4_i32 = arith.constant 4 : i32
    %45 = arith.addi %0, %c4_i32 : i32
    %46 = arith.index_cast %45 : i32 to index
    %47 = memref.load %arg1[%46] : memref<16xi32, #tpu.memory_space<smem>>
    %c0_i32_17 = arith.constant 0 : i32
    %c511_i32_18 = arith.constant 511 : i32
    %48 = arith.maxsi %c0_i32_17, %47 : i32
    %49 = arith.minsi %c511_i32_18, %48 : i32
    %50 = arith.index_cast %49 : i32 to index
    %c0_19 = arith.constant 0 : index
    %51 = vector.load %arg2[%50, %c0_19] : memref<512x128xf32, #tpu.memory_space<vmem>>, vector<1x128xf32>
    %cst_20 = arith.constant 11.3137083 : f32
    %52 = vector.broadcast %cst_20 : f32 to vector<1x128xf32>
    %53 = arith.mulf %51, %52 : vector<1x128xf32>
    %54 = arith.index_cast %c4_i32 : i32 to index
    %c0_21 = arith.constant 0 : index
    %55 = vector.load %arg3[%54, %c0_21] : memref<8x128xf32, #tpu.memory_space<vmem>>, vector<1x128xf32>
    tpu.vector_store %arg3[%54, %c0_21], %53 {strides = array<i32>} : memref<8x128xf32, #tpu.memory_space<vmem>>, vector<1x128xf32>,
    %c5_i32 = arith.constant 5 : i32
    %56 = arith.addi %0, %c5_i32 : i32
    %57 = arith.index_cast %56 : i32 to index
    %58 = memref.load %arg1[%57] : memref<16xi32, #tpu.memory_space<smem>>
    %c0_i32_22 = arith.constant 0 : i32
    %c511_i32_23 = arith.constant 511 : i32
    %59 = arith.maxsi %c0_i32_22, %58 : i32
    %60 = arith.minsi %c511_i32_23, %59 : i32
    %61 = arith.index_cast %60 : i32 to index
    %c0_24 = arith.constant 0 : index
    %62 = vector.load %arg2[%61, %c0_24] : memref<512x128xf32, #tpu.memory_space<vmem>>, vector<1x128xf32>
    %cst_25 = arith.constant 11.3137083 : f32
    %63 = vector.broadcast %cst_25 : f32 to vector<1x128xf32>
    %64 = arith.mulf %62, %63 : vector<1x128xf32>
    %65 = arith.index_cast %c5_i32 : i32 to index
    %c0_26 = arith.constant 0 : index
    %66 = vector.load %arg3[%65, %c0_26] : memref<8x128xf32, #tpu.memory_space<vmem>>, vector<1x128xf32>
    tpu.vector_store %arg3[%65, %c0_26], %64 {strides = array<i32>} : memref<8x128xf32, #tpu.memory_space<vmem>>, vector<1x128xf32>,
    %c6_i32 = arith.constant 6 : i32
    %67 = arith.addi %0, %c6_i32 : i32
    %68 = arith.index_cast %67 : i32 to index
    %69 = memref.load %arg1[%68] : memref<16xi32, #tpu.memory_space<smem>>
    %c0_i32_27 = arith.constant 0 : i32
    %c511_i32_28 = arith.constant 511 : i32
    %70 = arith.maxsi %c0_i32_27, %69 : i32
    %71 = arith.minsi %c511_i32_28, %70 : i32
    %72 = arith.index_cast %71 : i32 to index
    %c0_29 = arith.constant 0 : index
    %73 = vector.load %arg2[%72, %c0_29] : memref<512x128xf32, #tpu.memory_space<vmem>>, vector<1x128xf32>
    %cst_30 = arith.constant 11.3137083 : f32
    %74 = vector.broadcast %cst_30 : f32 to vector<1x128xf32>
    %75 = arith.mulf %73, %74 : vector<1x128xf32>
    %76 = arith.index_cast %c6_i32 : i32 to index
    %c0_31 = arith.constant 0 : index
    %77 = vector.load %arg3[%76, %c0_31] : memref<8x128xf32, #tpu.memory_space<vmem>>, vector<1x128xf32>
    tpu.vector_store %arg3[%76, %c0_31], %75 {strides = array<i32>} : memref<8x128xf32, #tpu.memory_space<vmem>>, vector<1x128xf32>,
    %c7_i32 = arith.constant 7 : i32
    %78 = arith.addi %0, %c7_i32 : i32
    %79 = arith.index_cast %78 : i32 to index
    %80 = memref.load %arg1[%79] : memref<16xi32, #tpu.memory_space<smem>>
    %c0_i32_32 = arith.constant 0 : i32
    %c511_i32_33 = arith.constant 511 : i32
    %81 = arith.maxsi %c0_i32_32, %80 : i32
    %82 = arith.minsi %c511_i32_33, %81 : i32
    %83 = arith.index_cast %82 : i32 to index
    %c0_34 = arith.constant 0 : index
    %84 = vector.load %arg2[%83, %c0_34] : memref<512x128xf32, #tpu.memory_space<vmem>>, vector<1x128xf32>
    %cst_35 = arith.constant 11.3137083 : f32
    %85 = vector.broadcast %cst_35 : f32 to vector<1x128xf32>
    %86 = arith.mulf %84, %85 : vector<1x128xf32>
    %87 = arith.index_cast %c7_i32 : i32 to index
    %c0_36 = arith.constant 0 : index
    %88 = vector.load %arg3[%87, %c0_36] : memref<8x128xf32, #tpu.memory_space<vmem>>, vector<1x128xf32>
    tpu.vector_store %arg3[%87, %c0_36], %86 {strides = array<i32>} : memref<8x128xf32, #tpu.memory_space<vmem>>, vector<1x128xf32>,
    %c8_i32_37 = arith.constant 8 : i32
    return
  }
  func.func @transform_0(%arg0: i32, %arg1: memref<16xi32, #tpu.memory_space<smem>>) -> (i32, i32) {
    %c0_i32 = arith.constant 0 : i32
    %c0_i32_0 = arith.constant 0 : i32
    %c0_i32_1 = arith.constant 0 : i32
    return %c0_i32, %c0_i32_0 : i32, i32
  }
  func.func @transform_1(%arg0: i32, %arg1: memref<16xi32, #tpu.memory_space<smem>>) -> (i32, i32) {
    %c0_i32 = arith.constant 0 : i32
    %c0_i32_0 = arith.constant 0 : i32
    return %arg0, %c0_i32 : i32, i32
  }
}

</mosaic_0001>

<llo_original>
// kernel: tpu_custom_call.1
$region0: #{tpu_custom_call.1}
  #allocation0 [shape = 'u32[]', space=smem, size = 0x4, offset = 0x4, fixed_abs, tag = 'smem constant byte address 0x4 - core index']
  #allocation1 [shape = 'u32[144,128]{1,0:T(1,128)}', space=vmem, size = 0x12000, scoped, tag = 'internal scratch']
  #allocation2 [shape = 's32[1]{0}', space=sflag, size = 0x4, scoped, tag = 'scoped memory for tpu_custom_call.1']
  #allocation3 [shape = 'u8[512]{0}', space=smem, size = 0x200, scoped, tag = 'prefetched SMEM operand 0']
  %s0 = inlined_call_operand.hbm [shape: s32[16], index: 0, kind: input, shape index: {}]
  %s1 = inlined_call_operand.hbm [shape: f32[512,128], index: 1, kind: input, shape index: {}]
  %s2 = inlined_call_operand.hbm [shape: f32[16,128], index: 2, kind: output, shape index: {}]
  %s3 = sld [smem:[#allocation0]]
  $region41: #{tpu_custom_call.1} parent=0
    _
  %s5 = ssub.s32 1, %s3
  %s6 = scalar_select 0, %s5, %s3
  %8 = dma.hbm_to_smem %s0, 16, [#allocation3], [#allocation2]
  %9 = dma.done [#allocation2], 16
  %10 = sfence
  $region1: #{tpu_custom_call.1} parent=0
    #allocation4 [shape = 'u8[262144]{0}', space=vmem, size = 0x40000, scoped, tag = 'input window, operand 1, single buffered']
    #allocation5 [shape = 's32[2]{0}', space=sflag, size = 0x8, scoped, tag = 'scoped memory for tpu_custom_call.1']
    #allocation6 [shape = 's32[2]{0}', space=sflag, size = 0x8, scoped, tag = 'scoped memory for tpu_custom_call.1']
    #allocation7 [shape = 'u8[8192]{0}', space=vmem, size = 0x2000, scoped, tag = 'output window, operand 0']
    %11 = vsyncpa [#allocation5], 0
    %12 = vsyncpa [#allocation6], 0
    %s13 = scalar_lea.sflag [#allocation6], 1
    %14 = vsyncpa %s13, 0
    loop: start=0, step=1, limit=4
    $region2: #{tpu_custom_call.1} parent=1 // loop_pre_header
      _
    $region3: #{tpu_custom_call.1} parent=1 // loop_header
      %s16 = sphi 0, %s20
      %p17 = scmp.ge.s32.totalorder %s16, 4
      %s24 = sphi 0, %s24
      %s26 = sphi 0, %s24
      %s27 = sphi 0, %s26
      %s41 = sphi 0, %s27
      %s47 = sphi 0, %s49
      %s50 = sphi 0, %s47
      %s51 = sphi 0, %s50
      %s67 = sphi 0, %s51
    $region4: #{tpu_custom_call.1} parent=1 // loop_header_branch
      %19 = sbr.rel (%p17) target = $region8
    $region5: #{tpu_custom_call.1} parent=1 // loop_body
      %s21 = ssub.s32 %s16, 1
      %s22 = ssub.s32 %s16, 2
      %s23 = sadd.s32 %s16, 1
      %s25 = sadd.s32 %s24, 1
      %p28 = scmp.eq.s32.totalorder %s16, 1
      %p29 = scmp.ne.s32.totalorder %s24, %s26
      %p30 = scmp.eq.s32.totalorder %s16, 0
      %p31 = por %p29, %p30
      %p32 = scmp.ne.s32.totalorder %s24, %s26
      %p33 = scmp.eq.s32.totalorder %s21, 1
      %p34 = por %p32, %p33
      %p35 = scmp.ne.s32.totalorder %s26, %s27
      %p36 = scmp.eq.s32.totalorder %s21, 0
      %p37 = por %p35, %p36
      %p38 = scmp.ne.s32.totalorder %s26, %s27
      %p39 = scmp.eq.s32.totalorder %s22, 1
      %p40 = por %p38, %p39
      %p42 = scmp.ne.s32.totalorder %s27, %s41
      %p43 = scmp.eq.s32.totalorder %s22, 0
      %p44 = por %p42, %p43
      %s45 = ssub.s32 %s16, %s23
      %p46 = scmp.eq.s32.totalorder %s45, 0
      %s48 = sadd.s32 %s47, 1
      %s49 = scalar_select %p46, %s47, %s48
      %p52 = pneg %p46
      %p53 = scmp.eq.s32.totalorder %s16, 1
      %p54 = por %p52, %p53
      %p55 = scmp.ne.s32.totalorder %s47, %s50
      %p56 = scmp.eq.s32.totalorder %s16, 0
      %p57 = por %p55, %p56
      %p58 = scmp.ne.s32.totalorder %s47, %s50
      %p59 = scmp.eq.s32.totalorder %s21, 1
      %p60 = por %p58, %p59
      %p61 = scmp.ne.s32.totalorder %s50, %s51
      %p62 = scmp.eq.s32.totalorder %s21, 0
      %p63 = por %p61, %p62
      %p64 = scmp.ne.s32.totalorder %s50, %s51
      %p65 = scmp.eq.s32.totalorder %s22, 1
      %p66 = por %p64, %p65
      %p68 = scmp.ne.s32.totalorder %s51, %s67
      %p69 = scmp.eq.s32.totalorder %s22, 0
      %p70 = por %p68, %p69
      %p71 = scmp.le.s32.totalorder 1, %s16
      %p72 = scmp.lt.s32.totalorder %s16, 3
      %p73 = pnand %p71, %p72
      %p74 = pneg %p73
      // Predicated region
      $region9: #{tpu_custom_call.1} parent=5 // pred_check
        _
      $region10: #{tpu_custom_call.1} parent=5 // pred_check_branch
        %76 = sbr.rel (%p73) target = $region12
      $region11: #{tpu_custom_call.1} parent=5 // pred_region
        %s77 = ssub.s32 %s16, 1
        // Predicated region
        $region13: #{tpu_custom_call.1} parent=11 // pred_check
          %p78 = pneg %p37
        $region14: #{tpu_custom_call.1} parent=11 // pred_check_branch
          %80 = sbr.rel (%p78) target = $region16
        $region15: #{tpu_custom_call.1} parent=11 // pred_region
          %s82 = ssub.s32 8192, 8192
          %83 = vsyncadd [#allocation5], %s82
          %s84 = sshll.u32 [#allocation4], 4
          %s85 = int_to_ptr.vmem [resolvable:$true] %s84
          %90 = dma.hbm_to_vmem [thread:$0]  %s1, 8192, %s85, [#allocation5], 128, 128, 8
        $region16: #{tpu_custom_call.1} parent=11 // pred_fallthru
          _
      $region12: #{tpu_custom_call.1} parent=5 // pred_fallthru
        _
      %p91 = scmp.lt.s32.totalorder %s16, 2
      // Predicated region
      $region17: #{tpu_custom_call.1} parent=5 // pred_check
        %p92 = pneg %p91
      $region18: #{tpu_custom_call.1} parent=5 // pred_check_branch
        %94 = sbr.rel (%p92) target = $region20
      $region19: #{tpu_custom_call.1} parent=5 // pred_region
        _
      $region20: #{tpu_custom_call.1} parent=5 // pred_fallthru
        _
      %p95 = scmp.le.s32.totalorder 1, %s16
      %p96 = scmp.lt.s32.totalorder %s16, 3
      %p97 = pnand %p95, %p96
      %p98 = pneg %p97
      // Predicated region
      $region21: #{tpu_custom_call.1} parent=5 // pred_check
        _
      $region22: #{tpu_custom_call.1} parent=5 // pred_check_branch
        %100 = sbr.rel (%p97) target = $region24
      $region23: #{tpu_custom_call.1} parent=5 // pred_region
        %s101 = ssub.s32 %s16, 1
        // Predicated region
        $region25: #{tpu_custom_call.1} parent=23 // pred_check
          %p102 = pneg %p37
        $region26: #{tpu_custom_call.1} parent=23 // pred_check_branch
          %104 = sbr.rel (%p102) target = $region28
        $region27: #{tpu_custom_call.1} parent=23 // pred_region
          %105 = dma.done [#allocation5], 8192
        $region28: #{tpu_custom_call.1} parent=23 // pred_fallthru
          _
        %p106 = pneg %p37
        %p107 = pneg %p34
        %p108 = pneg %p63
        %p109 = pneg %p60
        %s110 = sand.u32 %s50, 1
        %s111 = scalar_lea.sflag [#allocation6], %s110
        %s112 = sand.u32 %s50, 1
        %s113 = smul.addr %s112, 8
        %s114 = scalar_lea.vmem [#allocation7], %s113
        %s115 = smul.u32 %s21, 8
        %s116 = sld [smem:[#allocation3 + %s115]]
        %p117 = scmp.gt.s32.totalorder %s116, 0
        %s118 = scalar_select %p117, %s116, 0
        %p119 = scmp.lt.s32.totalorder %s118, 511
        %s120 = scalar_select %p119, %s118, 511
        %s121 = scalar_lea.vmem [#allocation4], %s120
        %v122 = vld [vmem:[%s121] sm:$0x1]
        %v123 = vmul.f32 %v122, 11.313708
        %124 = vst [vmem:[%s114] sm:$0x1] %v123
        %s125 = sadd.s32 %s115, 1
        %s126 = sld [smem:[#allocation3 + %s125]]
        %p127 = scmp.gt.s32.totalorder %s126, 0
        %s128 = scalar_select %p127, %s126, 0
        %p129 = scmp.lt.s32.totalorder %s128, 511
        %s130 = scalar_select %p129, %s128, 511
        %s131 = scalar_lea.vmem [#allocation4], %s130
        %v132 = vld [vmem:[%s131] sm:$0x1]
        %v133 = vmul.f32 %v132, 11.313708
        %134 = vst [vmem:[%s114 + $0x1] sm:$0x1] %v133
        %s135 = sadd.s32 %s115, 2
        %s136 = sld [smem:[#allocation3 + %s135]]
        %p137 = scmp.gt.s32.totalorder %s136, 0
        %s138 = scalar_select %p137, %s136, 0
        %p139 = scmp.lt.s32.totalorder %s138, 511
        %s140 = scalar_select %p139, %s138, 511
        %s141 = scalar_lea.vmem [#allocation4], %s140
        %v142 = vld [vmem:[%s141] sm:$0x1]
        %v143 = vmul.f32 %v142, 11.313708
        %144 = vst [vmem:[%s114 + $0x2] sm:$0x1] %v143
        %s145 = sadd.s32 %s115, 3
        %s146 = sld [smem:[#allocation3 + %s145]]
        %p147 = scmp.gt.s32.totalorder %s146, 0
        %s148 = scalar_select %p147, %s146, 0
        %p149 = scmp.lt.s32.totalorder %s148, 511
        %s150 = scalar_select %p149, %s148, 511
        %s151 = scalar_lea.vmem [#allocation4], %s150
        %v152 = vld [vmem:[%s151] sm:$0x1]
        %v153 = vmul.f32 %v152, 11.313708
        %154 = vst [vmem:[%s114 + $0x3] sm:$0x1] %v153
        %s155 = sadd.s32 %s115, 4
        %s156 = sld [smem:[#allocation3 + %s155]]
        %p157 = scmp.gt.s32.totalorder %s156, 0
        %s158 = scalar_select %p157, %s156, 0
        %p159 = scmp.lt.s32.totalorder %s158, 511
        %s160 = scalar_select %p159, %s158, 511
        %s161 = scalar_lea.vmem [#allocation4], %s160
        %v162 = vld [vmem:[%s161] sm:$0x1]
        %v163 = vmul.f32 %v162, 11.313708
        %164 = vst [vmem:[%s114 + $0x4] sm:$0x1] %v163
        %s165 = sadd.s32 %s115, 5
        %s166 = sld [smem:[#allocation3 + %s165]]
        %p167 = scmp.gt.s32.totalorder %s166, 0
        %s168 = scalar_select %p167, %s166, 0
        %p169 = scmp.lt.s32.totalorder %s168, 511
        %s170 = scalar_select %p169, %s168, 511
        %s171 = scalar_lea.vmem [#allocation4], %s170
        %v172 = vld [vmem:[%s171] sm:$0x1]
        %v173 = vmul.f32 %v172, 11.313708
        %174 = vst [vmem:[%s114 + $0x5] sm:$0x1] %v173
        %s175 = sadd.s32 %s115, 6
        %s176 = sld [smem:[#allocation3 + %s175]]
        %p177 = scmp.gt.s32.totalorder %s176, 0
        %s178 = scalar_select %p177, %s176, 0
        %p179 = scmp.lt.s32.totalorder %s178, 511
        %s180 = scalar_select %p179, %s178, 511
        %s181 = scalar_lea.vmem [#allocation4], %s180
        %v182 = vld [vmem:[%s181] sm:$0x1]
        %v183 = vmul.f32 %v182, 11.313708
        %184 = vst [vmem:[%s114 + $0x6] sm:$0x1] %v183
        %s185 = sadd.s32 %s115, 7
        %s186 = sld [smem:[#allocation3 + %s185]]
        %p187 = scmp.gt.s32.totalorder %s186, 0
        %s188 = scalar_select %p187, %s186, 0
        %p189 = scmp.lt.s32.totalorder %s188, 511
        %s190 = scalar_select %p189, %s188, 511
        %s191 = scalar_lea.vmem [#allocation4], %s190
        %v192 = vld [vmem:[%s191] sm:$0x1]
        %v193 = vmul.f32 %v192, 11.313708
        %194 = vst [vmem:[%s114 + $0x7] sm:$0x1] %v193
        %s195 = sand.u32 %s50, 1
        %s196 = scalar_lea.sflag [#allocation6], %s195
        %s197 = sand.u32 %s50, 1
        %s198 = smul.addr %s197, 8
        %s199 = scalar_lea.vmem [#allocation7], %s198
        // Predicated region
        $region29: #{tpu_custom_call.1} parent=23 // pred_check
          %p200 = pneg %p60
        $region30: #{tpu_custom_call.1} parent=23 // pred_check_branch
          %202 = sbr.rel (%p200) target = $region32
        $region31: #{tpu_custom_call.1} parent=23 // pred_region
          %s204 = ssub.s32 128, 128
          %205 = vsyncadd %s196, %s204
          %s206 = smul.addr %s21, 128
          %s207 = scalar_lea.hbm %s2, %s206
          %s209 = sshll.u32 %s199, 4
          %s210 = int_to_ptr.vmem [resolvable:$true] %s209
          %212 = dma.vmem_to_hbm [thread:$0]  %s210, 128, %s207, %s196
        $region32: #{tpu_custom_call.1} parent=23 // pred_fallthru
          _
      $region24: #{tpu_custom_call.1} parent=5 // pred_fallthru
        _
      %p213 = scmp.le.s32.totalorder 2, %s16
      // Predicated region
      $region33: #{tpu_custom_call.1} parent=5 // pred_check
        %p214 = pneg %p213
      $region34: #{tpu_custom_call.1} parent=5 // pred_check_branch
        %216 = sbr.rel (%p214) target = $region36
      $region35: #{tpu_custom_call.1} parent=5 // pred_region
        %s217 = ssub.s32 %s16, 2
        // Predicated region
        $region37: #{tpu_custom_call.1} parent=35 // pred_check
          %p218 = pneg %p66
        $region38: #{tpu_custom_call.1} parent=35 // pred_check_branch
          %220 = sbr.rel (%p218) target = $region40
        $region39: #{tpu_custom_call.1} parent=35 // pred_region
          %s221 = sand.u32 %s51, 1
          %s222 = scalar_lea.sflag [#allocation6], %s221
          %s223 = sand.u32 %s51, 1
          %s224 = smul.addr %s223, 8
          %s225 = scalar_lea.vmem [#allocation7], %s224
          %226 = dma.done %s222, 128
        $region40: #{tpu_custom_call.1} parent=35 // pred_fallthru
          _
      $region36: #{tpu_custom_call.1} parent=5 // pred_fallthru
        _
    $region6: #{tpu_custom_call.1} parent=1 // loop_footer
      %s20 = sadd.s32 1, %s16
    $region7: #{tpu_custom_call.1} parent=1 // loop_footer_branch
      %15 = sbr.rel target = $region3
    $region8: #{tpu_custom_call.1} parent=1 // loop_exit
      _
    %227 = vsyncpa [#allocation5], 1
    %s228 = scalar_lea.sflag [#allocation5], 1
    %229 = vsyncpa %s228, 1
    %230 = vsyncpa [#allocation6], 1
    %s231 = scalar_lea.sflag [#allocation6], 1
    %232 = vsyncpa %s231, 1

</llo_original>
